<compile_context>
chip_gen: v6e
topology: v6e:2x2x1
jax: 0.10.0
libtpu: 0.0.40
codegen_flags: <defaults>
</compile_context>

<pallas_src>
import functools

import jax
import jax.numpy as jnp
from jax.experimental import pallas as pl
from jax.experimental.pallas import tpu as pltpu

_LANE = 128


# --------------------------------------------------------------------------- #
# Kernel: accumulate [sum(sigmoid(p) * t), sum(sigmoid(p)), sum(t)] over grid
# --------------------------------------------------------------------------- #
def _dice_sums_kernel(pred_ref, targ_ref, out_ref, *, n_valid, block_rows):
    i = pl.program_id(0)

    @pl.when(i == 0)
    def _init():
        out_ref[0] = 0.0
        out_ref[1] = 0.0
        out_ref[2] = 0.0

    x = pred_ref[...].astype(jnp.float32)          # (block_rows, 128) logits
    t = targ_ref[...].astype(jnp.float32)          # (block_rows, 128) targets

    # Exact mask for the flattened-padding tail of the last block.
    row = jax.lax.broadcasted_iota(jnp.int32, x.shape, 0)
    col = jax.lax.broadcasted_iota(jnp.int32, x.shape, 1)
    idx = (i * block_rows + row) * _LANE + col
    valid = (idx < n_valid).astype(jnp.float32)

    s = jax.nn.sigmoid(x) * valid
    tv = t * valid

    out_ref[0] += jnp.sum(s * tv)                  # dice intersection
    out_ref[1] += jnp.sum(s)                       # sum sigmoid(pred)
    out_ref[2] += jnp.sum(tv)                      # sum targets


def _dice_sums(pred, targ, *, block_rows=2048):
    """Returns float32[3] = [intersection, sum(sigmoid(pred)), sum(targets)]."""
    n = pred.size
    rows = -(-n // _LANE)                          # ceil(n / 128)
    if rows <= block_rows:
        rows_p = max(8, -(-rows // 8) * 8)         # single block, (8,128)-aligned
        blk = rows_p
    else:
        rows_p = -(-rows // block_rows) * block_rows
        blk = block_rows
    pad = rows_p * _LANE - n

    p = jnp.pad(pred.reshape(-1), (0, pad)).reshape(rows_p, _LANE)
    t = jnp.pad(targ.reshape(-1), (0, pad)).reshape(rows_p, _LANE)

    grid = rows_p // blk
    kernel = functools.partial(_dice_sums_kernel, n_valid=n, block_rows=blk)
    return pl.pallas_call(
        kernel,
        out_shape=jax.ShapeDtypeStruct((3,), jnp.float32),
        grid=(grid,),
        in_specs=[pl.BlockSpec((blk, _LANE), lambda i: (i, 0)),
                  pl.BlockSpec((blk, _LANE), lambda i: (i, 0))],
        out_specs=pl.BlockSpec(memory_space=pltpu.MemorySpace.SMEM),
        compiler_params=pltpu.CompilerParams(
            dimension_semantics=("arbitrary",)),   # grid axis is a reduction
    )(p, t)


# --------------------------------------------------------------------------- #
# DiceLoss forward (scalar combination of kernel-reduced sums)
# --------------------------------------------------------------------------- #
def dice_loss(predictions, targets, smooth=1e-5, *, block_rows=2048):
    sums = _dice_sums(predictions, targets, block_rows=block_rows)
    intersection, pred_sum, targ_sum = sums[0], sums[1], sums[2]
    dice = (2.0 * intersection + smooth) / (pred_sum + targ_sum + smooth)
    return 1.0 - dice


# --------------------------------------------------------------------------- #
# Pure-JAX reference for checking
# --------------------------------------------------------------------------- #
def _ref_dice_loss(predictions, targets, smooth=1e-5):
    p = jax.nn.sigmoid(predictions.astype(jnp.float32)).reshape(-1)
    t = targets.astype(jnp.float32).reshape(-1)
    intersection = jnp.sum(p * t)
    dice = (2.0 * intersection + smooth) / (jnp.sum(p) + jnp.sum(t) + smooth)
    return 1.0 - dice


if __name__ == "__main__":
    key = jax.random.PRNGKey(0)
    k1, k2 = jax.random.split(key)

    predictions = jax.random.normal(k1, (2, 4, 16, 16), jnp.float32)      # logits
    targets = (jax.random.uniform(k2, (2, 4, 16, 16)) > 0.5).astype(jnp.float32)

    ref = _ref_dice_loss(predictions, targets)

    # Default (single-block) path.
    out = jax.jit(dice_loss)(predictions, targets)
    out = jax.block_until_ready(out)
    assert jnp.allclose(out, ref, rtol=1e-4, atol=1e-5), (out, ref)

    # Multi-step grid / SMEM-accumulator path (small block to force grid > 1).
    out2 = jax.jit(functools.partial(dice_loss, block_rows=8))(predictions, targets)
    out2 = jax.block_until_ready(out2)
    assert jnp.allclose(out2, ref, rtol=1e-4, atol=1e-5), (out2, ref)

    print("KERNEL_OK")
</pallas_src>

<mosaic_0001>
module attributes {stable_mosaic.version = 11 : i64} {
  func.func @_dice_sums_kernel(%arg0: i32, %arg1: memref<16x128xf32, #tpu.memory_space<vmem>>, %arg2: memref<16x128xf32, #tpu.memory_space<vmem>>, %arg3: memref<3xf32, #tpu.memory_space<smem>>) attributes {dimension_semantics = [#tpu.dimension_semantics<arbitrary>], iteration_bounds = array<i64: 1>, scalar_prefetch = 0 : i64, scratch_operands = 0 : i64, tpu.core_type = #tpu.core_type<tc>, window_params = [{transform_indices = @transform_0, window_bounds = array<i64: 16, 128>}, {transform_indices = @transform_1, window_bounds = array<i64: 16, 128>}, {transform_indices = @transform_2, window_bounds = array<i64: 3>}]} {
    %c0_i32 = arith.constant 0 : i32
    %0 = arith.cmpi eq, %arg0, %c0_i32 : i32
    %1 = arith.extui %0 : i1 to i32
    %c0_i32_0 = arith.constant 0 : i32
    %2 = arith.cmpi ne, %1, %c0_i32_0 : i32
    scf.if %2 {
      %cst_11 = arith.constant 0.000000e+00 : f32
      %c0_12 = arith.constant 0 : index
      %46 = memref.load %arg3[%c0_12] : memref<3xf32, #tpu.memory_space<smem>>
      memref.store %cst_11, %arg3[%c0_12] : memref<3xf32, #tpu.memory_space<smem>>
      %cst_13 = arith.constant 0.000000e+00 : f32
      %c1_14 = arith.constant 1 : index
      %47 = memref.load %arg3[%c1_14] : memref<3xf32, #tpu.memory_space<smem>>
      memref.store %cst_13, %arg3[%c1_14] : memref<3xf32, #tpu.memory_space<smem>>
      %cst_15 = arith.constant 0.000000e+00 : f32
      %c2_16 = arith.constant 2 : index
      %48 = memref.load %arg3[%c2_16] : memref<3xf32, #tpu.memory_space<smem>>
      memref.store %cst_15, %arg3[%c2_16] : memref<3xf32, #tpu.memory_space<smem>>
    } else {
    }
    %c0 = arith.constant 0 : index
    %c0_1 = arith.constant 0 : index
    %3 = vector.load %arg1[%c0, %c0_1] : memref<16x128xf32, #tpu.memory_space<vmem>>, vector<16x128xf32>
    %c0_2 = arith.constant 0 : index
    %c0_3 = arith.constant 0 : index
    %4 = vector.load %arg2[%c0_2, %c0_3] : memref<16x128xf32, #tpu.memory_space<vmem>>, vector<16x128xf32>
    %5 = tpu.iota {dimensions = array<i32: 0>} : vector<16x128xi32>
    %6 = tpu.iota {dimensions = array<i32: 1>} : vector<16x128xi32>
    %c16_i32 = arith.constant 16 : i32
    %7 = arith.muli %arg0, %c16_i32 : i32
    %8 = vector.broadcast %7 : i32 to vector<16x128xi32>
    %9 = arith.addi %8, %5 : vector<16x128xi32>
    %c128_i32 = arith.constant 128 : i32
    %10 = vector.broadcast %c128_i32 : i32 to vector<16x128xi32>
    %11 = arith.muli %9, %10 : vector<16x128xi32>
    %12 = arith.addi %11, %6 : vector<16x128xi32>
    %c2048_i32 = arith.constant 2048 : i32
    %13 = vector.broadcast %c2048_i32 : i32 to vector<16x128xi32>
    %14 = arith.cmpi slt, %12, %13 : vector<16x128xi32>
    %15 = arith.extui %14 : vector<16x128xi1> to vector<16x128xi32>
    %16 = arith.sitofp %15 : vector<16x128xi32> to vector<16x128xf32>
    %17 = arith.negf %3 : vector<16x128xf32>
    %18 = math.exp %17 : vector<16x128xf32>
    %cst = arith.constant 1.000000e+00 : f32
    %19 = vector.broadcast %cst : f32 to vector<16x128xf32>
    %20 = arith.addf %19, %18 : vector<16x128xf32>
    %21 = arith.divf %19, %20 : vector<16x128xf32>
    %22 = arith.mulf %21, %16 : vector<16x128xf32>
    %23 = arith.mulf %4, %16 : vector<16x128xf32>
    %c0_4 = arith.constant 0 : index
    %24 = memref.load %arg3[%c0_4] : memref<3xf32, #tpu.memory_space<smem>>
    %25 = arith.mulf %22, %23 : vector<16x128xf32>
    %26 = vector.shape_cast %25 : vector<16x128xf32> to vector<1x16x128xf32>
    %cst_5 = arith.constant dense<0.000000e+00> : vector<1xf32>
    %27 = vector.multi_reduction <add>, %26, %cst_5 [1, 2] : vector<1x16x128xf32> to vector<1xf32>
    %28 = vector.shape_cast %27 : vector<1xf32> to vector<1x1x1xf32>
    %29 = vector.extract %28[0, 0, 0] : f32 from vector<1x1x1xf32>
    %30 = arith.addf %24, %29 : f32
    %c0_6 = arith.constant 0 : index
    %31 = memref.load %arg3[%c0_6] : memref<3xf32, #tpu.memory_space<smem>>
    memref.store %30, %arg3[%c0_6] : memref<3xf32, #tpu.memory_space<smem>>
    %c1 = arith.constant 1 : index
    %32 = memref.load %arg3[%c1] : memref<3xf32, #tpu.memory_space<smem>>
    %33 = vector.shape_cast %22 : vector<16x128xf32> to vector<1x16x128xf32>
    %cst_7 = arith.constant dense<0.000000e+00> : vector<1xf32>
    %34 = vector.multi_reduction <add>, %33, %cst_7 [1, 2] : vector<1x16x128xf32> to vector<1xf32>
    %35 = vector.shape_cast %34 : vector<1xf32> to vector<1x1x1xf32>
    %36 = vector.extract %35[0, 0, 0] : f32 from vector<1x1x1xf32>
    %37 = arith.addf %32, %36 : f32
    %c1_8 = arith.constant 1 : index
    %38 = memref.load %arg3[%c1_8] : memref<3xf32, #tpu.memory_space<smem>>
    memref.store %37, %arg3[%c1_8] : memref<3xf32, #tpu.memory_space<smem>>
    %c2 = arith.constant 2 : index
    %39 = memref.load %arg3[%c2] : memref<3xf32, #tpu.memory_space<smem>>
    %40 = vector.shape_cast %23 : vector<16x128xf32> to vector<1x16x128xf32>
    %cst_9 = arith.constant dense<0.000000e+00> : vector<1xf32>
    %41 = vector.multi_reduction <add>, %40, %cst_9 [1, 2] : vector<1x16x128xf32> to vector<1xf32>
    %42 = vector.shape_cast %41 : vector<1xf32> to vector<1x1x1xf32>
    %43 = vector.extract %42[0, 0, 0] : f32 from vector<1x1x1xf32>
    %44 = arith.addf %39, %43 : f32
    %c2_10 = arith.constant 2 : index
    %45 = memref.load %arg3[%c2_10] : memref<3xf32, #tpu.memory_space<smem>>
    memref.store %44, %arg3[%c2_10] : memref<3xf32, #tpu.memory_space<smem>>
    return
  }
  func.func @transform_0(%arg0: i32) -> (i32, i32) {
    %c0_i32 = arith.constant 0 : i32
    %c0_i32_0 = arith.constant 0 : i32
    return %arg0, %c0_i32 : i32, i32
  }
  func.func @transform_1(%arg0: i32) -> (i32, i32) {
    %c0_i32 = arith.constant 0 : i32
    %c0_i32_0 = arith.constant 0 : i32
    return %arg0, %c0_i32 : i32, i32
  }
  func.func @transform_2(%arg0: i32) -> i32 {
    %c0_i32 = arith.constant 0 : i32
    %c0_i32_0 = arith.constant 0 : i32
    return %c0_i32 : i32
  }
}

</mosaic_0001>

<llo_original>
// kernel: dice_loss.1
$region0: #{dice_loss.1}
  #allocation0 [shape = 'u32[]', space=smem, size = 0x4, offset = 0x4, fixed_abs, tag = 'smem constant byte address 0x4 - core index']
  #allocation1 [shape = 'u32[144,128]{1,0:T(1,128)}', space=vmem, size = 0x12000, scoped, tag = 'internal scratch']
  %s0 = inlined_call_operand.vmem [shape: f32[16,128], index: 0, kind: input, shape index: {}]
  %s1 = inlined_call_operand.vmem [shape: f32[16,128], index: 1, kind: input, shape index: {}]
  %s2 = inlined_call_operand.vmem [shape: f32[3], index: 2, kind: output, shape index: {}]
  %s3 = sld [smem:[#allocation0]]
  $region22: #{dice_loss.1} parent=0
    _
  %s5 = ssub.s32 1, %s3
  %s6 = scalar_select 0, %s5, %s3
  $region1: #{dice_loss.1} parent=0
    #allocation2 [shape = 'u8[512]{0}', space=smem, size = 0x200, scoped, tag = 'output window, operand 0, single buffered']
    #allocation3 [shape = 's32[1]{0}', space=sflag, size = 0x4, scoped, tag = 'scoped memory for dice_loss.1']
    %7 = vsyncpa [#allocation3], 0
    // Predicated region
    $region2: #{dice_loss.1} parent=1 // pred_check
      _
    $region3: #{dice_loss.1} parent=1 // pred_check_branch
      %9 = sbr.rel (0) target = $region5
    $region4: #{dice_loss.1} parent=1 // pred_region
      _
    $region5: #{dice_loss.1} parent=1 // pred_fallthru
      _
    // Predicated region
    $region6: #{dice_loss.1} parent=1 // pred_check
      _
    $region7: #{dice_loss.1} parent=1 // pred_check_branch
      %11 = sbr.rel (0) target = $region9
    $region8: #{dice_loss.1} parent=1 // pred_region
      _
    $region9: #{dice_loss.1} parent=1 // pred_fallthru
      _
    %p12 = scmp.eq.s32.totalorder 0, 0
    // Predicated region
    $region10: #{dice_loss.1} parent=1 // pred_check
      %p13 = pneg %p12
    $region11: #{dice_loss.1} parent=1 // pred_check_branch
      %15 = sbr.rel (%p13) target = $region13
    $region12: #{dice_loss.1} parent=1 // pred_region
      %s16 = scalar_lea.smem [#allocation2], 0
      %17 = sst [smem:[%s16]] 0.0
      %s18 = scalar_lea.smem [#allocation2], 1
      %19 = sst [smem:[%s18]] 0.0
      %s20 = scalar_lea.smem [#allocation2], 2
      %21 = sst [smem:[%s20]] 0.0
    $region13: #{dice_loss.1} parent=1 // pred_fallthru
      _
    %v22 = vld [vmem:[%s0] sm:$0xff]
    %v23 = vld [vmem:[%s0 + $0x8] sm:$0xff]
    %v24 = vld [vmem:[%s1] sm:$0xff]
    %v25 = vld [vmem:[%s1 + $0x8] sm:$0xff]
    %v26 = vlaneseq
    %v27 = vshrl.u32 %v26, 7
    %v28 = vadd.s32 %v27, 8
    %v29 = vlaneseq
    %v30 = vand.u32 %v29, 127
    %s31 = smul.u32 0, 16
    %v32 = vstv %s31
    %v33 = vadd.s32 %v32, %v27
    %v34 = vadd.s32 %v32, %v28
    %v35 = vmul.u32 %v33, 128
    %v36 = vmul.u32 %v34, 128
    %v37 = vadd.s32 %v35, %v30
    %v38 = vadd.s32 %v36, %v30
    %vm39 = vcmp.lt.s32.totalorder %v37, 2048
    %vm40 = vcmp.lt.s32.totalorder %v38, 2048
    %v41 = vsel %vm39, 1, 0
    %v42 = vsel %vm40, 1, 0
    %v43 = vcvt.s32.f32 %v41
    %v44 = vcvt.s32.f32 %v42
    %v45 = vxor.u32 %v22, 2147483648
    %v46 = vxor.u32 %v23, 2147483648
    %v47 = vmul.f32 %v45, 1.442695
    %v48 = vpow.pop %v47
    %v49 = vmul.f32 %v46, 1.442695
    %v50 = vpow.pop %v49
    %v51 = vadd.f32 %v48, 1.0
    %v52 = vadd.f32 %v50, 1.0
    %v53 = vrcp.pop %v51
    %v54 = vmul.f32 1.0, %v53
    %v55 = vrcp.pop %v52
    %v56 = vmul.f32 1.0, %v55
    %v57 = vmul.f32 %v54, %v43
    %v58 = vmul.f32 %v56, %v44
    %v59 = vmul.f32 %v24, %v43
    %v60 = vmul.f32 %v25, %v44
    %s61 = sld [smem:[#allocation2]]
    %v62 = vmul.f32 %v57, %v59
    %v63 = vmul.f32 %v58, %v60
    %v64 = vadd.f32 %v62, %v63
    %65 = vadd.xlane.f32.xlu0 %v64
    %v66 = vpop.xlane.xlu0 %65
    %v67 = vrot.slane %v66, 4
    %v68 = vadd.f32 %v66, %v67
    %v69 = vrot.slane %v68, 2
    %v70 = vadd.f32 %v68, %v69
    %v71 = vrot.slane %v70, 1
    %v72 = vadd.f32 %v70, %v71
    %s73 = vtos %v72
    %s74 = sadd.f32 %s61, %s73
    %s75 = scalar_lea.smem [#allocation2], 0
    %76 = sst [smem:[%s75]] %s74
    %s77 = sld [smem:[#allocation2 + $0x1]]
    %v78 = vadd.f32 %v57, %v58
    %79 = vadd.xlane.f32.xlu0 %v78
    %v80 = vpop.xlane.xlu0 %79
    %v81 = vrot.slane %v80, 4
    %v82 = vadd.f32 %v80, %v81
    %v83 = vrot.slane %v82, 2
    %v84 = vadd.f32 %v82, %v83
    %v85 = vrot.slane %v84, 1
    %v86 = vadd.f32 %v84, %v85
    %s87 = vtos %v86
    %s88 = sadd.f32 %s77, %s87
    %s89 = scalar_lea.smem [#allocation2], 1
    %90 = sst [smem:[%s89]] %s88
    %s91 = sld [smem:[#allocation2 + $0x2]]
    %v92 = vadd.f32 %v59, %v60
    %93 = vadd.xlane.f32.xlu0 %v92
    %v94 = vpop.xlane.xlu0 %93
    %v95 = vrot.slane %v94, 4
    %v96 = vadd.f32 %v94, %v95
    %v97 = vrot.slane %v96, 2
    %v98 = vadd.f32 %v96, %v97
    %v99 = vrot.slane %v98, 1
    %v100 = vadd.f32 %v98, %v99
    %s101 = vtos %v100
    %s102 = sadd.f32 %s91, %s101
    %s103 = scalar_lea.smem [#allocation2], 2
    %104 = sst [smem:[%s103]] %s102
    // Predicated region
    $region14: #{dice_loss.1} parent=1 // pred_check
      _
    $region15: #{dice_loss.1} parent=1 // pred_check_branch
      %106 = sbr.rel (0) target = $region17
    $region16: #{dice_loss.1} parent=1 // pred_region
      %s108 = ssub.s32 16, 16
      %109 = vsyncadd [#allocation3], %s108
      %s111 = sshll.u32 %s2, 4
      %s112 = int_to_ptr.vmem [resolvable:$true] %s111
      %114 = dma.smem_to_vmem [#allocation2], 16, %s112, [#allocation3]
    $region17: #{dice_loss.1} parent=1 // pred_fallthru
      _
    // Predicated region
    $region18: #{dice_loss.1} parent=1 // pred_check
      _
    $region19: #{dice_loss.1} parent=1 // pred_check_branch
      %116 = sbr.rel (0) target = $region21
    $region20: #{dice_loss.1} parent=1 // pred_region
      %117 = dma.done [#allocation3], 16
    $region21: #{dice_loss.1} parent=1 // pred_fallthru
      _
    %118 = sfence
    %119 = vsyncpa [#allocation3], 1

</llo_original>
